<compile_context>
chip_gen: v5e
topology: v5e:2x2
jax: 0.10.0
libtpu: 0.0.40
codegen_flags: <defaults>
</compile_context>

<pallas_src>
import jax
import jax.numpy as jnp
from jax.experimental import pallas as pl
from jax.experimental.pallas import tpu as pltpu


def _nearest_upsample_kernel(sel_ref, x_ref, o_ref):
    # sel_ref: (W, Ws) one-hot column selector, grid-invariant (resident VMEM).
    # x_ref:   (BC*H, W)        input rows for BC whole planes.
    # o_ref:   (BC*H, sh*Ws)    column-expanded rows, sh lane-adjacent copies.
    x = x_ref[...]
    sel = sel_ref[...]
    if x.dtype != sel.dtype:          # only taken for integer inputs
        x = x.astype(sel.dtype)

    # Column (lane) expansion as a single large-M matmul:
    #   y[r, j] = sum_q x[r, q] * sel[q, j] = x[r, j // sw]   (exact: one-hot)
    y = jnp.dot(x, sel, preferred_element_type=jnp.float32).astype(o_ref.dtype)

    # Row (sublane) expansion: write sh copies side-by-side along lanes; the
    # (H, sh) -> Hs merge is a free row-major reshape in the wrapper.
    sh = o_ref.shape[1] // sel_ref.shape[1]
    o_ref[...] = y if sh == 1 else jnp.concatenate([y] * sh, axis=1)


def _choose_bc(NC, H, W, sh, sw, itemsize):
    """Planes per grid step: as large as a conservative VMEM budget allows,
    a divisor of NC, and with (BC*H) 8-aligned for the (8,128) BlockSpec rule."""
    budget = 24 * 1024 * 1024                      # double-buffered in+out blocks
    per_plane = 2 * (1 + sh * sw) * H * W * itemsize
    cap = max(1, budget // per_plane)
    if NC >= 2:
        cap = min(cap, max(1, NC // 2))            # >=2 steps -> both v7x TCs busy
    candidates = [bc for bc in range(1, NC + 1)
                  if NC % bc == 0 and ((bc * H) % 8 == 0 or bc == NC)]
    fitting = [bc for bc in candidates if bc <= cap]
    return max(fitting) if fitting else min(candidates)


def upsample_nearest(x, scale_factor=2):
    """Nearest-neighbor upsample of an NCHW tensor (PyTorch semantics)."""
    if isinstance(scale_factor, (tuple, list)):
        sh, sw = int(scale_factor[0]), int(scale_factor[1])
    else:
        sh = sw = int(scale_factor)
    assert sh >= 1 and sw >= 1, "integer scale_factor >= 1 required"

    N, C, H, W = x.shape
    Hs, Ws = H * sh, W * sw
    NC = N * C
    itemsize = jnp.dtype(x.dtype).itemsize

    # One-hot column selector built ONCE outside the kernel (grid-invariant):
    # sel[q, j] = 1 iff q == j // sw  (PyTorch 'nearest' index mapping).
    sel_dtype = x.dtype if jnp.issubdtype(x.dtype, jnp.floating) else jnp.float32
    q = jnp.arange(W, dtype=jnp.int32)[:, None]
    j = jnp.arange(Ws, dtype=jnp.int32)[None, :]
    sel = (q == (j // sw)).astype(sel_dtype)

    BC = _choose_bc(NC, H, W, sh, sw, itemsize)
    R = BC * H                                     # rows per block

    x2d = x.reshape(NC * H, W)                     # free reshape

    out2d = pl.pallas_call(
        _nearest_upsample_kernel,
        out_shape=jax.ShapeDtypeStruct((NC * H, sh * Ws), x.dtype),
        grid_spec=pltpu.PrefetchScalarGridSpec(
            num_scalar_prefetch=0,
            grid=(NC // BC,),
            in_specs=[
                pl.BlockSpec((W, Ws), lambda i: (0, 0)),      # selector: resident
                pl.BlockSpec((R, W), lambda i: (i, 0)),       # BC planes of input
            ],
            out_specs=pl.BlockSpec((R, sh * Ws), lambda i: (i, 0)),
        ),
        compiler_params=pltpu.CompilerParams(
            dimension_semantics=("parallel",),
            vmem_limit_bytes=48 * 1024 * 1024,
        ),
        cost_estimate=pl.CostEstimate(
            flops=2 * NC * H * W * Ws,
            transcendentals=0,
            bytes_accessed=(1 + sh * sw) * NC * H * W * itemsize,
        ),
    )(sel, x2d)

    # Free row-major reshapes: split columns into (sh, W, sw), merge (H, sh)->Hs
    # and (W, sw)->Ws.  out[n,c, p*sh+s, q*sw+t] = x[n,c,p,q].
    return out2d.reshape(N, C, H, sh, W, sw).reshape(N, C, Hs, Ws)


if __name__ == "__main__":
    key = jax.random.PRNGKey(0)
    x = jax.random.normal(key, (2, 4, 16, 16), dtype=jnp.float32)

    # Pallas kernel (Upsample(scale_factor=2, mode='nearest'))
    y = upsample_nearest(x, scale_factor=2)
    y = jax.block_until_ready(y)

    # Reference: PyTorch nearest -> out[i, j] = x[i // 2, j // 2]
    ri = jnp.arange(32) // 2
    ref = x[:, :, ri, :][:, :, :, ri]

    assert y.shape == (2, 4, 32, 32), y.shape
    assert y.dtype == x.dtype, y.dtype
    assert jnp.allclose(y, ref), "mismatch vs nearest-neighbor reference"

    print("KERNEL_OK")
</pallas_src>

<mosaic_0001>
module attributes {stable_mosaic.version = 11 : i64} {
  func.func @_nearest_upsample_kernel(%arg0: i32, %arg1: memref<16x32xf32, #tpu.memory_space<vmem>>, %arg2: memref<64x16xf32, #tpu.memory_space<vmem>>, %arg3: memref<64x64xf32, #tpu.memory_space<vmem>>) attributes {dimension_semantics = [#tpu.dimension_semantics<parallel>], iteration_bounds = array<i64: 2>, scalar_prefetch = 0 : i64, scratch_operands = 0 : i64, tpu.core_type = #tpu.core_type<tc>, window_params = [{pipeline_mode = #tpu.pipeline_mode<synchronous>, transform_indices = @transform_0, window_bounds = array<i64: 16, 32>}, {transform_indices = @transform_1, window_bounds = array<i64: 64, 16>}, {transform_indices = @transform_2, window_bounds = array<i64: 64, 64>}]} {
    %c0 = arith.constant 0 : index
    %c0_0 = arith.constant 0 : index
    %0 = vector.load %arg2[%c0, %c0_0] : memref<64x16xf32, #tpu.memory_space<vmem>>, vector<64x16xf32>
    %c0_1 = arith.constant 0 : index
    %c0_2 = arith.constant 0 : index
    %1 = vector.load %arg1[%c0_1, %c0_2] : memref<16x32xf32, #tpu.memory_space<vmem>>, vector<16x32xf32>
    %cst = arith.constant dense<0.000000e+00> : vector<64x32xf32>
    %2 = tpu.matmul %0, %1, %cst {dimension_numbers = #tpu.dot_dimension_numbers<[1], [0], [0], [1], [0, 0, 1, 1], [], []>} : vector<64x16xf32>, vector<16x32xf32>, vector<64x32xf32> -> vector<64x32xf32>
    %3 = tpu.concatenate %2, %2 in 1 : vector<64x32xf32>, vector<64x32xf32> -> vector<64x64xf32>
    %c0_3 = arith.constant 0 : index
    %c0_4 = arith.constant 0 : index
    %4 = vector.load %arg3[%c0_3, %c0_4] : memref<64x64xf32, #tpu.memory_space<vmem>>, vector<64x64xf32>
    tpu.vector_store %arg3[%c0_3, %c0_4], %3 {strides = array<i32>} : memref<64x64xf32, #tpu.memory_space<vmem>>, vector<64x64xf32>,
    return
  }
  func.func @transform_0(%arg0: i32) -> (i32, i32) {
    %c0_i32 = arith.constant 0 : i32
    %c0_i32_0 = arith.constant 0 : i32
    %c0_i32_1 = arith.constant 0 : i32
    return %c0_i32, %c0_i32_0 : i32, i32
  }
  func.func @transform_1(%arg0: i32) -> (i32, i32) {
    %c0_i32 = arith.constant 0 : i32
    %c0_i32_0 = arith.constant 0 : i32
    return %arg0, %c0_i32 : i32, i32
  }
  func.func @transform_2(%arg0: i32) -> (i32, i32) {
    %c0_i32 = arith.constant 0 : i32
    %c0_i32_0 = arith.constant 0 : i32
    return %arg0, %c0_i32 : i32, i32
  }
}

</mosaic_0001>

<llo_original>
// kernel: tpu_custom_call.1
$region0: #{tpu_custom_call.1}
  #allocation0 [shape = 'u32[]', space=smem, size = 0x4, offset = 0x4, fixed_abs, tag = 'smem constant byte address 0x4 - core index']
  #allocation1 [shape = 'u32[72,128]{1,0:T(1,128)}', space=vmem, size = 0x9000, scoped, tag = 'internal scratch']
  %s0 = inlined_call_operand.vmem [shape: f32[16,32], index: 0, kind: input, shape index: {}]
  %s1 = inlined_call_operand.vmem [shape: f32[128,16], index: 1, kind: input, shape index: {}]
  %s2 = inlined_call_operand.vmem [shape: f32[128,64], index: 2, kind: output, shape index: {}]
  %s3 = sld [smem:[#allocation0]]
  $region41: #{tpu_custom_call.1} parent=0
    _
  %s5 = ssub.s32 1, %s3
  %s6 = scalar_select 0, %s5, %s3
  loop: start=0, step=1, limit=4
  $region2: #{tpu_custom_call.1} parent=0 // loop_pre_header
    _
  $region3: #{tpu_custom_call.1} parent=0 // loop_header
    %s8 = sphi 0, %s12
    %p9 = scmp.ge.s32.totalorder %s8, 4
    %s16 = sphi 0, %s16
    %s18 = sphi 0, %s16
    %s19 = sphi 0, %s18
    %s33 = sphi 0, %s19
    %s39 = sphi 0, %s41
    %s42 = sphi 0, %s39
    %s43 = sphi 0, %s42
    %s59 = sphi 0, %s43
    %s65 = sphi 0, %s67
    %s68 = sphi 0, %s65
    %s69 = sphi 0, %s68
    %s85 = sphi 0, %s69
  $region4: #{tpu_custom_call.1} parent=0 // loop_header_branch
    %11 = sbr.rel (%p9) target = $region8
  $region5: #{tpu_custom_call.1} parent=0 // loop_body
    %s13 = ssub.s32 %s8, 1
    %s14 = ssub.s32 %s8, 2
    %s15 = sadd.s32 %s8, 1
    %s17 = sadd.s32 %s16, 1
    %p20 = scmp.eq.s32.totalorder %s8, 1
    %p21 = scmp.ne.s32.totalorder %s16, %s18
    %p22 = scmp.eq.s32.totalorder %s8, 0
    %p23 = por %p21, %p22
    %p24 = scmp.ne.s32.totalorder %s16, %s18
    %p25 = scmp.eq.s32.totalorder %s13, 1
    %p26 = por %p24, %p25
    %p27 = scmp.ne.s32.totalorder %s18, %s19
    %p28 = scmp.eq.s32.totalorder %s13, 0
    %p29 = por %p27, %p28
    %p30 = scmp.ne.s32.totalorder %s18, %s19
    %p31 = scmp.eq.s32.totalorder %s14, 1
    %p32 = por %p30, %p31
    %p34 = scmp.ne.s32.totalorder %s19, %s33
    %p35 = scmp.eq.s32.totalorder %s14, 0
    %p36 = por %p34, %p35
    %s37 = ssub.s32 %s8, %s15
    %p38 = scmp.eq.s32.totalorder %s37, 0
    %s40 = sadd.s32 %s39, 1
    %s41 = scalar_select %p38, %s39, %s40
    %p44 = pneg %p38
    %p45 = scmp.eq.s32.totalorder %s8, 1
    %p46 = por %p44, %p45
    %p47 = scmp.ne.s32.totalorder %s39, %s42
    %p48 = scmp.eq.s32.totalorder %s8, 0
    %p49 = por %p47, %p48
    %p50 = scmp.ne.s32.totalorder %s39, %s42
    %p51 = scmp.eq.s32.totalorder %s13, 1
    %p52 = por %p50, %p51
    %p53 = scmp.ne.s32.totalorder %s42, %s43
    %p54 = scmp.eq.s32.totalorder %s13, 0
    %p55 = por %p53, %p54
    %p56 = scmp.ne.s32.totalorder %s42, %s43
    %p57 = scmp.eq.s32.totalorder %s14, 1
    %p58 = por %p56, %p57
    %p60 = scmp.ne.s32.totalorder %s43, %s59
    %p61 = scmp.eq.s32.totalorder %s14, 0
    %p62 = por %p60, %p61
    %s63 = ssub.s32 %s8, %s15
    %p64 = scmp.eq.s32.totalorder %s63, 0
    %s66 = sadd.s32 %s65, 1
    %s67 = scalar_select %p64, %s65, %s66
    %p70 = pneg %p64
    %p71 = scmp.eq.s32.totalorder %s8, 1
    %p72 = por %p70, %p71
    %p73 = scmp.ne.s32.totalorder %s65, %s68
    %p74 = scmp.eq.s32.totalorder %s8, 0
    %p75 = por %p73, %p74
    %p76 = scmp.ne.s32.totalorder %s65, %s68
    %p77 = scmp.eq.s32.totalorder %s13, 1
    %p78 = por %p76, %p77
    %p79 = scmp.ne.s32.totalorder %s68, %s69
    %p80 = scmp.eq.s32.totalorder %s13, 0
    %p81 = por %p79, %p80
    %p82 = scmp.ne.s32.totalorder %s68, %s69
    %p83 = scmp.eq.s32.totalorder %s14, 1
    %p84 = por %p82, %p83
    %p86 = scmp.ne.s32.totalorder %s69, %s85
    %p87 = scmp.eq.s32.totalorder %s14, 0
    %p88 = por %p86, %p87
    %p89 = scmp.le.s32.totalorder 1, %s8
    %p90 = scmp.lt.s32.totalorder %s8, 3
    %p91 = pnand %p89, %p90
    %p92 = pneg %p91
    // Predicated region
    $region9: #{tpu_custom_call.1} parent=5 // pred_check
      _
    $region10: #{tpu_custom_call.1} parent=5 // pred_check_branch
      %94 = sbr.rel (%p91) target = $region12
    $region11: #{tpu_custom_call.1} parent=5 // pred_region
      %s95 = ssub.s32 %s8, 1
      // Predicated region
      $region13: #{tpu_custom_call.1} parent=11 // pred_check
        %p96 = pneg %p29
      $region14: #{tpu_custom_call.1} parent=11 // pred_check_branch
        %98 = sbr.rel (%p96) target = $region16
      $region15: #{tpu_custom_call.1} parent=11 // pred_region
        _
      $region16: #{tpu_custom_call.1} parent=11 // pred_fallthru
        _
    $region12: #{tpu_custom_call.1} parent=5 // pred_fallthru
      _
    %p99 = scmp.lt.s32.totalorder %s8, 2
    // Predicated region
    $region17: #{tpu_custom_call.1} parent=5 // pred_check
      %p100 = pneg %p99
    $region18: #{tpu_custom_call.1} parent=5 // pred_check_branch
      %102 = sbr.rel (%p100) target = $region20
    $region19: #{tpu_custom_call.1} parent=5 // pred_region
      // Predicated region
      $region21: #{tpu_custom_call.1} parent=19 // pred_check
        %p103 = pneg %p49
      $region22: #{tpu_custom_call.1} parent=19 // pred_check_branch
        %105 = sbr.rel (%p103) target = $region24
      $region23: #{tpu_custom_call.1} parent=19 // pred_region
        %s106 = smul.u32 8, %s8
        %p107 = scmp.lt.s32.totalorder %s106, 15
        %s108 = scalar_select %p107, %s106, 15
        %s109 = smul.addr %s108, 8
        %s110 = scalar_lea.vmem %s1, %s109
        %s111 = smul.u32 8, %s8
      $region24: #{tpu_custom_call.1} parent=19 // pred_fallthru
        _
    $region20: #{tpu_custom_call.1} parent=5 // pred_fallthru
      _
    %p112 = scmp.le.s32.totalorder 1, %s8
    %p113 = scmp.lt.s32.totalorder %s8, 3
    %p114 = pnand %p112, %p113
    %p115 = pneg %p114
    // Predicated region
    $region25: #{tpu_custom_call.1} parent=5 // pred_check
      _
    $region26: #{tpu_custom_call.1} parent=5 // pred_check_branch
      %117 = sbr.rel (%p114) target = $region28
    $region27: #{tpu_custom_call.1} parent=5 // pred_region
      %s118 = ssub.s32 %s8, 1
      %p119 = pneg %p29
      %p120 = pneg %p26
      %s121 = smul.u32 8, %s13
      %p122 = scmp.lt.s32.totalorder %s121, 15
      %s123 = scalar_select %p122, %s121, 15
      %s124 = smul.addr %s123, 8
      %s125 = scalar_lea.vmem %s1, %s124
      %p126 = pneg %p55
      %p127 = pneg %p52
      %p128 = pneg %p81
      %p129 = pneg %p78
      %s130 = smul.u32 8, %s13
      %p131 = scmp.lt.s32.totalorder %s130, 15
      %s132 = scalar_select %p131, %s130, 15
      %s133 = smul.addr %s132, 8
      %s134 = scalar_lea.vmem %s2, %s133
      %s135 = smul.u32 8, %s13
      %p136 = scmp.lt.s32.totalorder %s135, 15
      %s137 = scalar_select %p136, %s135, 15
      %s138 = smul.addr %s137, 8
      %s139 = scalar_lea.vmem %s1, %s138
      %s140 = smul.u32 8, %s13
      %s141 = smul.u32 8, %s13
      %p142 = scmp.lt.s32.totalorder %s141, 15
      %s143 = scalar_select %p142, %s141, 15
      %s144 = smul.addr %s143, 8
      %s145 = scalar_lea.vmem %s2, %s144
      %s146 = smul.u32 8, %s13
      %v147 = vld [vmem:[%s139] sm:$0xff]
      %v148 = vld [vmem:[%s139 + $0x8] sm:$0xff]
      %v149 = vld [vmem:[%s139 + $0x10] sm:$0xff]
      %v150 = vld [vmem:[%s139 + $0x18] sm:$0xff]
      %v151 = vld [vmem:[%s139 + $0x20] sm:$0xff]
      %v152 = vld [vmem:[%s139 + $0x28] sm:$0xff]
      %v153 = vld [vmem:[%s139 + $0x30] sm:$0xff]
      %v154 = vld [vmem:[%s139 + $0x38] sm:$0xff]
      %v155 = vld [vmem:[%s0] sm:$0xff]
      %v156 = vld [vmem:[%s0 + $0x8] sm:$0xff]
      %vm157 = vcmask 130048
      %v159 = vsel %vm157, %v147, 0
      %v162 = vsel %vm157, %v148, 0
      %v165 = vsel %vm157, %v149, 0
      %v168 = vsel %vm157, %v150, 0
      %v171 = vsel %vm157, %v151, 0
      %v174 = vsel %vm157, %v152, 0
      %v177 = vsel %vm157, %v153, 0
      %v180 = vsel %vm157, %v154, 0
      %182 = vmatpush.msra.mxu0 0.0
      %183 = vmatpush.msra.mxu0 0.0
      %184 = vmatpush.msra.mxu0 0.0
      %185 = vmatpush.msra.mxu0 0.0
      %186 = vmatpush.msra.mxu0 0.0
      %187 = vmatpush.msra.mxu0 0.0
      %188 = vmatpush.msra.mxu0 0.0
      %189 = vmatpush.msra.mxu0 0.0
      %190 = vmatpush.msra.mxu0 0.0
      %191 = vmatpush.msra.mxu0 0.0
      %192 = vmatpush.msra.mxu0 0.0
      %193 = vmatpush.msra.mxu0 0.0
      %194 = vmatpush.msra.mxu0 0.0
      %195 = vmatpush.msra.mxu0 0.0
      %196 = vmatpush.msra.mxu0 %v156
      %197 = vmatpush.msra.mxu0 %v155
      %198 = vmatmul.f32.gmra.mxu0 %v159
      %v199 = vpop.f32.mrf.mxu0
      %v200 = vadd.f32 0.0, %v199
      %201 = vmatmul.f32.gmra.mxu0 %v162
      %v202 = vpop.f32.mrf.mxu0
      %v203 = vadd.f32 0.0, %v202
      %204 = vmatmul.f32.gmra.mxu0 %v165
      %v205 = vpop.f32.mrf.mxu0
      %v206 = vadd.f32 0.0, %v205
      %207 = vmatmul.f32.gmra.mxu0 %v168
      %v208 = vpop.f32.mrf.mxu0
      %v209 = vadd.f32 0.0, %v208
      %210 = vmatmul.f32.gmra.mxu0 %v171
      %v211 = vpop.f32.mrf.mxu0
      %v212 = vadd.f32 0.0, %v211
      %213 = vmatmul.f32.gmra.mxu0 %v174
      %v214 = vpop.f32.mrf.mxu0
      %v215 = vadd.f32 0.0, %v214
      %216 = vmatmul.f32.gmra.mxu0 %v177
      %v217 = vpop.f32.mrf.mxu0
      %v218 = vadd.f32 0.0, %v217
      %219 = vmatmul.f32.gmra.mxu0 %v180
      %v220 = vpop.f32.mrf.mxu0
      %v221 = vadd.f32 0.0, %v220
      %222 = vdwg.mxu0
      %231 = vrot.lane.b32.xlu0 %v200, 32
      %v232 = vpop.permute.xlu0 %231
      %233 = vrot.lane.b32.xlu0 %v203, 32
      %v234 = vpop.permute.xlu0 %233
      %235 = vrot.lane.b32.xlu0 %v206, 32
      %v236 = vpop.permute.xlu0 %235
      %237 = vrot.lane.b32.xlu0 %v209, 32
      %v238 = vpop.permute.xlu0 %237
      %239 = vrot.lane.b32.xlu0 %v212, 32
      %v240 = vpop.permute.xlu0 %239
      %241 = vrot.lane.b32.xlu0 %v215, 32
      %v242 = vpop.permute.xlu0 %241
      %243 = vrot.lane.b32.xlu0 %v218, 32
      %v244 = vpop.permute.xlu0 %243
      %245 = vrot.lane.b32.xlu0 %v221, 32
      %v246 = vpop.permute.xlu0 %245
      %vm255 = vcmask 261120
      %v256 = vsel %vm255, %v200, %v232
      %v257 = vsel %vm255, %v203, %v234
      %v258 = vsel %vm255, %v206, %v236
      %v259 = vsel %vm255, %v209, %v238
      %v260 = vsel %vm255, %v212, %v240
      %v261 = vsel %vm255, %v215, %v242
      %v262 = vsel %vm255, %v218, %v244
      %v263 = vsel %vm255, %v221, %v246
      %vm264 = vcmask 523264
      %265 = vst.msk [vmem:[%s145] sm:$0xff] %vm264, %v256
      %266 = vst.msk [vmem:[%s145 + $0x8] sm:$0xff] %vm264, %v257
      %267 = vst.msk [vmem:[%s145 + $0x10] sm:$0xff] %vm264, %v258
      %268 = vst.msk [vmem:[%s145 + $0x18] sm:$0xff] %vm264, %v259
      %269 = vst.msk [vmem:[%s145 + $0x20] sm:$0xff] %vm264, %v260
      %270 = vst.msk [vmem:[%s145 + $0x28] sm:$0xff] %vm264, %v261
      %271 = vst.msk [vmem:[%s145 + $0x30] sm:$0xff] %vm264, %v262
      %272 = vst.msk [vmem:[%s145 + $0x38] sm:$0xff] %vm264, %v263
      %s273 = smul.u32 8, %s13
      %p274 = scmp.lt.s32.totalorder %s273, 15
      %s275 = scalar_select %p274, %s273, 15
      %s276 = smul.addr %s275, 8
      %s277 = scalar_lea.vmem %s2, %s276
      // Predicated region
      $region29: #{tpu_custom_call.1} parent=27 // pred_check
        %p278 = pneg %p78
      $region30: #{tpu_custom_call.1} parent=27 // pred_check_branch
        %280 = sbr.rel (%p278) target = $region32
      $region31: #{tpu_custom_call.1} parent=27 // pred_region
        %s281 = smul.u32 8, %s13
      $region32: #{tpu_custom_call.1} parent=27 // pred_fallthru
        _
    $region28: #{tpu_custom_call.1} parent=5 // pred_fallthru
      _
    %p282 = scmp.le.s32.totalorder 2, %s8
    // Predicated region
    $region33: #{tpu_custom_call.1} parent=5 // pred_check
      %p283 = pneg %p282
    $region34: #{tpu_custom_call.1} parent=5 // pred_check_branch
      %285 = sbr.rel (%p283) target = $region36
    $region35: #{tpu_custom_call.1} parent=5 // pred_region
      %s286 = ssub.s32 %s8, 2
      // Predicated region
      $region37: #{tpu_custom_call.1} parent=35 // pred_check
        %p287 = pneg %p84
      $region38: #{tpu_custom_call.1} parent=35 // pred_check_branch
        %289 = sbr.rel (%p287) target = $region40
      $region39: #{tpu_custom_call.1} parent=35 // pred_region
        %s290 = smul.u32 8, %s14
        %p291 = scmp.lt.s32.totalorder %s290, 15
        %s292 = scalar_select %p291, %s290, 15
        %s293 = smul.addr %s292, 8
        %s294 = scalar_lea.vmem %s2, %s293
      $region40: #{tpu_custom_call.1} parent=35 // pred_fallthru
        _
    $region36: #{tpu_custom_call.1} parent=5 // pred_fallthru
      _
  $region6: #{tpu_custom_call.1} parent=0 // loop_footer
    %s12 = sadd.s32 1, %s8
  $region7: #{tpu_custom_call.1} parent=0 // loop_footer_branch
    %7 = sbr.rel target = $region3
  $region8: #{tpu_custom_call.1} parent=0 // loop_exit
    _

</llo_original>
